<compile_context>
chip_gen: v5e
topology: v5e:2x2
jax: 0.10.0
libtpu: 0.0.40
codegen_flags: <defaults>
</compile_context>

<pallas_src>
import functools

import jax
import jax.numpy as jnp
from jax.experimental import pallas as pl
from jax.experimental.pallas import tpu as pltpu

_LANES = 128
_SUBLANES = 8


def _ce_loss_kernel(logits_ref, labels_ref, out_ref, *, label_smoothing: float,
                    num_rows: int):
    """Per-tile cross-entropy partial sum.

    logits_ref: (TB, C) native dtype   labels_ref: (TB, 1) int32
    out_ref:    (1, 8, 128) float32 (lane-dense block holding the broadcast partial)
    """
    pid = pl.program_id(0)
    x = logits_ref[...]                                  # (TB, C), native dtype
    labels = labels_ref[...]                             # (TB, 1) int32
    TB, C = x.shape

    # Numerically-stable pieces of log-softmax, without materializing logp.
    row_max = jnp.max(x, axis=-1, keepdims=True)         # (TB, 1)
    shifted = x - row_max                                 # (TB, C), native dtype

    sum_exp = jnp.sum(jnp.exp(shifted), axis=-1, keepdims=True,
                      dtype=jnp.float32)                  # (TB, 1) f32
    lse = jnp.log(sum_exp)                                # (TB, 1) f32

    # Gather shifted[row, label_row] via a masked reduction over the class lanes.
    class_idx = jax.lax.broadcasted_iota(jnp.int32, (TB, C), 1)
    tgt_shift = jnp.sum(jnp.where(class_idx == labels, shifted,
                                  jnp.zeros_like(shifted)),
                        axis=-1, keepdims=True, dtype=jnp.float32)  # (TB, 1)
    nll = lse - tgt_shift                                 # -log p[target], (TB, 1)

    eps = float(label_smoothing)
    if eps != 0.0:
        sum_shift = jnp.sum(shifted, axis=-1, keepdims=True,
                            dtype=jnp.float32)            # (TB, 1)
        sum_logp = sum_shift - jnp.float32(C) * lse       # sum_c log p[c]
        per_row = jnp.float32(1.0 - eps) * nll - jnp.float32(eps / C) * sum_logp
    else:
        per_row = nll

    # Mask padded rows of the last (partial) batch tile.
    row_ids = pid * TB + jax.lax.broadcasted_iota(jnp.int32, (TB, 1), 0)
    per_row = jnp.where(row_ids < num_rows, per_row, 0.0)

    partial = jnp.sum(per_row)                            # f32 scalar
    out_ref[...] = jnp.broadcast_to(partial, out_ref.shape).astype(out_ref.dtype)


def ce_loss(inputs, labels, label_smoothing: float = 0.0, *, block_rows=None):
    """JAX/Pallas equivalent of CELoss.forward.

    Args:
      inputs: dict with 'features' (B, feat_dim) [unused by the loss, as in the
              PyTorch module] and 'logits' (B, class_num).
      labels: (B,) integer class labels.
      label_smoothing: label smoothing factor (static).
      block_rows: optional override of the batch tile size (rounded to 8).
    Returns:
      scalar float32 loss.
    """
    logits = inputs["logits"]
    B, C = logits.shape
    labels2d = labels.reshape(B, 1).astype(jnp.int32)
    itemsize = jnp.dtype(logits.dtype).itemsize

    b_padded = ((B + _SUBLANES - 1) // _SUBLANES) * _SUBLANES
    if block_rows is None:
        # Budget ~12 MiB of working data: 2x (double buffer) input tile plus ~4
        # f32-wide in-kernel temporaries per row.  Conservative for v7x's 64 MiB VMEM.
        vmem_working_budget = 12 * 1024 * 1024
        bytes_per_row = C * (2 * itemsize + 16)
        tb = (vmem_working_budget // max(bytes_per_row, 1)) // _SUBLANES * _SUBLANES
        tb = min(tb, 1024)
    else:
        tb = ((int(block_rows) + _SUBLANES - 1) // _SUBLANES) * _SUBLANES
    tb = max(_SUBLANES, min(tb, b_padded))
    grid = pl.cdiv(B, tb)

    kernel = functools.partial(
        _ce_loss_kernel, label_smoothing=float(label_smoothing), num_rows=B)

    cost = pl.CostEstimate(
        flops=int(5 * B * C),
        transcendentals=int(B * C),
        bytes_accessed=int(B * C * itemsize + B * 4 + grid * _SUBLANES * _LANES * 4),
    )

    partials = pl.pallas_call(
        kernel,
        out_shape=jax.ShapeDtypeStruct((grid, _SUBLANES, _LANES), jnp.float32),
        grid=(grid,),
        in_specs=[
            pl.BlockSpec((tb, C), lambda i: (i, 0)),
            pl.BlockSpec((tb, 1), lambda i: (i, 0)),
        ],
        out_specs=pl.BlockSpec((1, _SUBLANES, _LANES), lambda i: (i, 0, 0)),
        compiler_params=pltpu.CompilerParams(
            dimension_semantics=("parallel",),
            vmem_limit_bytes=32 * 1024 * 1024,
        ),
        cost_estimate=cost,
    )(logits, labels2d)

    # One partial per tile lives at [:, 0, 0]; finish the reduction + mean here.
    return jnp.sum(partials[:, 0, 0]) / jnp.float32(B)


def _ce_loss_ref(inputs, labels, label_smoothing: float = 0.0):
    """Pure-JAX reference (matches torch CrossEntropyLoss(reduction='sum') / B)."""
    logits = inputs["logits"].astype(jnp.float32)
    B, C = logits.shape
    logp = jax.nn.log_softmax(logits, axis=-1)
    onehot = jax.nn.one_hot(labels, C, dtype=jnp.float32)
    q = (1.0 - label_smoothing) * onehot + label_smoothing / C
    per_row = -jnp.sum(q * logp, axis=-1)
    return jnp.sum(per_row) / B


if __name__ == "__main__":
    key = jax.random.PRNGKey(0)
    k_feat, k_logit, k_lab = jax.random.split(key, 3)

    batch = 20          # deliberately not a multiple of 8 -> exercises tail masking
    feat_dim = 32
    class_num = 128

    features = jax.random.normal(k_feat, (batch, feat_dim), dtype=jnp.float32)
    logits = jax.random.normal(k_logit, (batch, class_num), dtype=jnp.float32)
    labels = jax.random.randint(k_lab, (batch,), 0, class_num, dtype=jnp.int32)
    inputs = {"features": features, "logits": logits}

    # (label_smoothing, block_rows override): default single tile, multi-tile grid,
    # and the label-smoothing path on a multi-tile grid.
    for eps, br in ((0.0, None), (0.0, 8), (0.1, 8)):
        out = jax.block_until_ready(
            ce_loss(inputs, labels, label_smoothing=eps, block_rows=br))
        ref = jax.block_until_ready(
            _ce_loss_ref(inputs, labels, label_smoothing=eps))
        assert jnp.allclose(out, ref, rtol=1e-5, atol=1e-5), (eps, br, out, ref)

    print("KERNEL_OK")
</pallas_src>

<mosaic_0001>
module attributes {stable_mosaic.version = 11 : i64} {
  func.func @_ce_loss_kernel(%arg0: i32, %arg1: memref<24x128xf32, #tpu.memory_space<vmem>>, %arg2: memref<24x1xi32, #tpu.memory_space<vmem>>, %arg3: memref<1x8x128xf32, #tpu.memory_space<vmem>>) attributes {dimension_semantics = [#tpu.dimension_semantics<parallel>], iteration_bounds = array<i64: 1>, scalar_prefetch = 0 : i64, scratch_operands = 0 : i64, tpu.core_type = #tpu.core_type<tc>, window_params = [{transform_indices = @transform_0, window_bounds = array<i64: 24, 128>}, {transform_indices = @transform_1, window_bounds = array<i64: 24, 1>}, {transform_indices = @transform_2, window_bounds = array<i64: 1, 8, 128>}]} {
    %c0 = arith.constant 0 : index
    %c0_0 = arith.constant 0 : index
    %0 = vector.load %arg1[%c0, %c0_0] : memref<24x128xf32, #tpu.memory_space<vmem>>, vector<24x128xf32>
    %c0_1 = arith.constant 0 : index
    %c0_2 = arith.constant 0 : index
    %1 = vector.load %arg2[%c0_1, %c0_2] : memref<24x1xi32, #tpu.memory_space<vmem>>, vector<24x1xi32>
    %cst = arith.constant dense<0xFF800000> : vector<24xf32>
    %2 = vector.multi_reduction <maximumf>, %0, %cst [1] : vector<24x128xf32> to vector<24xf32>
    %3 = vector.shape_cast %2 : vector<24xf32> to vector<24x1xf32>
    %4 = vector.broadcast %3 : vector<24x1xf32> to vector<24x128xf32>
    %5 = arith.subf %0, %4 : vector<24x128xf32>
    %6 = math.exp %5 : vector<24x128xf32>
    %cst_3 = arith.constant dense<0.000000e+00> : vector<24xf32>
    %7 = vector.multi_reduction <add>, %6, %cst_3 [1] : vector<24x128xf32> to vector<24xf32>
    %8 = vector.shape_cast %7 : vector<24xf32> to vector<24x1xf32>
    %9 = math.log %8 : vector<24x1xf32>
    %10 = tpu.iota {dimensions = array<i32: 1>} : vector<24x128xi32>
    %11 = vector.broadcast %1 : vector<24x1xi32> to vector<24x128xi32>
    %12 = arith.cmpi eq, %10, %11 : vector<24x128xi32>
    %cst_4 = arith.constant 0.000000e+00 : f32
    %13 = vector.broadcast %cst_4 : f32 to vector<24x128xf32>
    %14 = arith.select %12, %5, %13 : vector<24x128xi1>, vector<24x128xf32>
    %cst_5 = arith.constant dense<0.000000e+00> : vector<24xf32>
    %15 = vector.multi_reduction <add>, %14, %cst_5 [1] : vector<24x128xf32> to vector<24xf32>
    %16 = vector.shape_cast %15 : vector<24xf32> to vector<24x1xf32>
    %17 = arith.subf %9, %16 : vector<24x1xf32>
    %c24_i32 = arith.constant 24 : i32
    %18 = arith.muli %arg0, %c24_i32 : i32
    %19 = tpu.iota {dimensions = array<i32: 0>} : vector<24x1xi32>
    %20 = vector.broadcast %18 : i32 to vector<24x1xi32>
    %21 = arith.addi %20, %19 : vector<24x1xi32>
    %c20_i32 = arith.constant 20 : i32
    %22 = vector.broadcast %c20_i32 : i32 to vector<24x1xi32>
    %23 = arith.cmpi slt, %21, %22 : vector<24x1xi32>
    %cst_6 = arith.constant 0.000000e+00 : f32
    %24 = vector.broadcast %cst_6 : f32 to vector<24x1xf32>
    %25 = arith.select %23, %17, %24 : vector<24x1xi1>, vector<24x1xf32>
    %26 = vector.shape_cast %25 : vector<24x1xf32> to vector<1x24x1xf32>
    %cst_7 = arith.constant dense<0.000000e+00> : vector<1xf32>
    %27 = vector.multi_reduction <add>, %26, %cst_7 [1, 2] : vector<1x24x1xf32> to vector<1xf32>
    %28 = vector.shape_cast %27 : vector<1xf32> to vector<1x1x1xf32>
    %29 = vector.extract %28[0, 0, 0] : f32 from vector<1x1x1xf32>
    %30 = vector.broadcast %29 : f32 to vector<1x8x128xf32>
    %c0_8 = arith.constant 0 : index
    %c0_9 = arith.constant 0 : index
    %c0_10 = arith.constant 0 : index
    %31 = vector.load %arg3[%c0_8, %c0_9, %c0_10] : memref<1x8x128xf32, #tpu.memory_space<vmem>>, vector<1x8x128xf32>
    tpu.vector_store %arg3[%c0_8, %c0_9, %c0_10], %30 {strides = array<i32>} : memref<1x8x128xf32, #tpu.memory_space<vmem>>, vector<1x8x128xf32>,
    return
  }
  func.func @transform_0(%arg0: i32) -> (i32, i32) {
    %c0_i32 = arith.constant 0 : i32
    %c0_i32_0 = arith.constant 0 : i32
    return %arg0, %c0_i32 : i32, i32
  }
  func.func @transform_1(%arg0: i32) -> (i32, i32) {
    %c0_i32 = arith.constant 0 : i32
    %c0_i32_0 = arith.constant 0 : i32
    return %arg0, %c0_i32 : i32, i32
  }
  func.func @transform_2(%arg0: i32) -> (i32, i32, i32) {
    %c0_i32 = arith.constant 0 : i32
    %c0_i32_0 = arith.constant 0 : i32
    %c0_i32_1 = arith.constant 0 : i32
    return %arg0, %c0_i32, %c0_i32_0 : i32, i32, i32
  }
}

</mosaic_0001>

<llo_original>
// kernel: tpu_custom_call.1
$region0: #{tpu_custom_call.1}
  #allocation0 [shape = 'u32[]', space=smem, size = 0x4, offset = 0x4, fixed_abs, tag = 'smem constant byte address 0x4 - core index']
  #allocation1 [shape = 'u32[72,128]{1,0:T(1,128)}', space=vmem, size = 0x9000, scoped, tag = 'internal scratch']
  %s0 = inlined_call_operand.vmem [shape: f32[20,128], index: 0, kind: input, shape index: {}]
  %s1 = inlined_call_operand.vmem [shape: s32[20,1], index: 1, kind: input, shape index: {}]
  %s2 = inlined_call_operand.hbm [shape: f32[1,8,128], index: 2, kind: output, shape index: {}]
  %s3 = sld [smem:[#allocation0]]
  $region18: #{tpu_custom_call.1} parent=0
    _
  %s5 = ssub.s32 1, %s3
  %s6 = scalar_select 0, %s5, %s3
  $region1: #{tpu_custom_call.1} parent=0
    #allocation2 [shape = 'u8[4096]{0}', space=vmem, size = 0x1000, scoped, tag = 'output window, operand 0, single buffered']
    #allocation3 [shape = 's32[1]{0}', space=sflag, size = 0x4, scoped, tag = 'scoped memory for tpu_custom_call.1']
    %7 = vsyncpa [#allocation3], 0
    // Predicated region
    $region2: #{tpu_custom_call.1} parent=1 // pred_check
      _
    $region3: #{tpu_custom_call.1} parent=1 // pred_check_branch
      %9 = sbr.rel (0) target = $region5
    $region4: #{tpu_custom_call.1} parent=1 // pred_region
      _
    $region5: #{tpu_custom_call.1} parent=1 // pred_fallthru
      _
    // Predicated region
    $region6: #{tpu_custom_call.1} parent=1 // pred_check
      _
    $region7: #{tpu_custom_call.1} parent=1 // pred_check_branch
      %11 = sbr.rel (0) target = $region9
    $region8: #{tpu_custom_call.1} parent=1 // pred_region
      _
    $region9: #{tpu_custom_call.1} parent=1 // pred_fallthru
      _
    %v12 = vld [vmem:[%s0] sm:$0xff]
    %v13 = vld [vmem:[%s0 + $0x8] sm:$0xff]
    %v14 = vld [vmem:[%s0 + $0x10] sm:$0xff]
    %v15 = vld [vmem:[%s1] sm:$0xff]
    %v16 = vld [vmem:[%s1 + $0x8] sm:$0xff]
    %v17 = vld [vmem:[%s1 + $0x10] sm:$0xff]
    %18 = vmax.xlane.f32.xlu0 %v12
    %v19 = vpop.xlane.xlu0 %18
    %20 = vmax.xlane.f32.xlu0 %v13
    %v21 = vpop.xlane.xlu0 %20
    %22 = vmax.xlane.f32.xlu0 %v14
    %v23 = vpop.xlane.xlu0 %22
    %v24 = vsub.f32 %v12, %v19
    %v25 = vsub.f32 %v13, %v21
    %v26 = vsub.f32 %v14, %v23
    %v27 = vmul.f32 %v24, 1.442695
    %v28 = vpow.pop %v27
    %v29 = vmul.f32 %v25, 1.442695
    %v30 = vpow.pop %v29
    %v31 = vmul.f32 %v26, 1.442695
    %v32 = vpow.pop %v31
    %33 = vadd.xlane.f32.xlu0 %v28
    %v34 = vpop.xlane.xlu0 %33
    %35 = vadd.xlane.f32.xlu0 %v30
    %v36 = vpop.xlane.xlu0 %35
    %37 = vadd.xlane.f32.xlu0 %v32
    %v38 = vpop.xlane.xlu0 %37
    %v39 = vlog2.pop %v34
    %v40 = vmul.f32 %v39, 0.6931472
    %v41 = vlog2.pop %v36
    %v42 = vmul.f32 %v41, 0.6931472
    %v43 = vlog2.pop %v38
    %v44 = vmul.f32 %v43, 0.6931472
    %v45 = vlaneseq
    %v46 = vand.u32 %v45, 127
    %47 = vset.pattern.permute.xlu0 0
    %48 = vperm.xlu0 %47, %v15
    %v49 = vpop.permute.xlu0 %48
    %50 = vset.pattern.permute.xlu0 0
    %51 = vperm.xlu0 %50, %v16
    %v52 = vpop.permute.xlu0 %51
    %53 = vset.pattern.permute.xlu0 0
    %54 = vperm.xlu0 %53, %v17
    %v55 = vpop.permute.xlu0 %54
    %vm56 = vcmp.eq.s32.totalorder %v46, %v49
    %vm57 = vcmp.eq.s32.totalorder %v46, %v52
    %vm58 = vcmp.eq.s32.totalorder %v46, %v55
    %v59 = vsel %vm56, %v24, 0.0
    %v60 = vsel %vm57, %v25, 0.0
    %v61 = vsel %vm58, %v26, 0.0
    %62 = vadd.xlane.f32.xlu0 %v59
    %v63 = vpop.xlane.xlu0 %62
    %64 = vadd.xlane.f32.xlu0 %v60
    %v65 = vpop.xlane.xlu0 %64
    %66 = vadd.xlane.f32.xlu0 %v61
    %v67 = vpop.xlane.xlu0 %66
    %v68 = vsub.f32 %v40, %v63
    %v69 = vsub.f32 %v42, %v65
    %v70 = vsub.f32 %v44, %v67
    %s71 = smul.u32 0, 24
    %v72 = vlaneseq
    %v73 = vshrl.u32 %v72, 7
    %v74 = vadd.s32 %v73, 8
    %v75 = vadd.s32 %v73, 16
    %v76 = vstv %s71
    %v77 = vadd.s32 %v76, %v73
    %v78 = vadd.s32 %v76, %v74
    %v79 = vadd.s32 %v76, %v75
    %vm80 = vcmp.lt.s32.totalorder %v77, 20
    %vm81 = vcmp.lt.s32.totalorder %v78, 20
    %vm82 = vcmp.lt.s32.totalorder %v79, 20
    %v83 = vsel %vm80, %v68, 0.0
    %v84 = vsel %vm81, %v69, 0.0
    %v85 = vsel %vm82, %v70, 0.0
    %vm86 = vcmask 7168
    %v87 = vsel %vm86, %v83, 0.0
    %v88 = vsel %vm86, %v84, 0.0
    %v89 = vadd.f32 %v87, %v88
    %v90 = vsel %vm86, %v85, 0.0
    %v91 = vadd.f32 %v89, %v90
    %92 = vadd.xlane.f32.xlu0 %v91
    %v93 = vpop.xlane.xlu0 %92
    %v94 = vrot.slane %v93, 4
    %v95 = vadd.f32 %v93, %v94
    %v96 = vrot.slane %v95, 2
    %v97 = vadd.f32 %v95, %v96
    %v98 = vrot.slane %v97, 1
    %v99 = vadd.f32 %v97, %v98
    %s100 = vtos %v99
    %v101 = vstv %s100
    %102 = vst [vmem:[#allocation2] sm:$0xff] %v101
    // Predicated region
    $region10: #{tpu_custom_call.1} parent=1 // pred_check
      _
    $region11: #{tpu_custom_call.1} parent=1 // pred_check_branch
      %104 = sbr.rel (0) target = $region13
    $region12: #{tpu_custom_call.1} parent=1 // pred_region
      %106 = vsyncadd [#allocation3], 0
      %s108 = sshll.u32 [#allocation2], 4
      %s109 = int_to_ptr.vmem [resolvable:$true] %s108
      %s110 = sshll.u32 %s2, 4
      %s111 = int_to_ptr.hbm [resolvable:$true] %s110
      %113 = dma.vmem_to_hbm [thread:$0]  %s109, 128, %s111, [#allocation3]
    $region13: #{tpu_custom_call.1} parent=1 // pred_fallthru
      _
    // Predicated region
    $region14: #{tpu_custom_call.1} parent=1 // pred_check
      _
    $region15: #{tpu_custom_call.1} parent=1 // pred_check_branch
      %115 = sbr.rel (0) target = $region17
    $region16: #{tpu_custom_call.1} parent=1 // pred_region
      %117 = dma.done [#allocation3], 128
    $region17: #{tpu_custom_call.1} parent=1 // pred_fallthru
      _
    %118 = vsyncpa [#allocation3], 1

</llo_original>
